<compile_context>
chip_gen: v7x
topology: tpu7x:2x2x1
jax: 0.10.0
libtpu: 0.0.40
codegen_flags: <defaults>
</compile_context>

<pallas_src>
import jax
import jax.numpy as jnp
from jax.experimental import pallas as pl
from jax.experimental.pallas import tpu as pltpu


def _myloss_kernel(logits_ref, clab_ref, rout_ref, rlab_ref, lmbda_ref, out_ref):
    lab = clab_ref[...]                              # (M, L) int, values in {0, 1}
    pos = lab == 1
    eqf = pos.astype(jnp.float32)                    # positive-anchor mask

    # ---- 2-class cross entropy via stable softplus of the margin -----------------
    logits = logits_ref[...].astype(jnp.float32)     # (M, 2, L), cast in-kernel
    l0 = logits[:, 0, :]                             # (M, L) logits for class 0
    l1 = logits[:, 1, :]                             # (M, L) logits for class 1
    margin = jnp.where(pos, l0 - l1, l1 - l0)        # logit(wrong) - logit(right)
    # softplus(margin) = max(margin, 0) + log(1 + exp(-|margin|))  (stable)
    ce = jnp.maximum(margin, 0.0) + jnp.log(1.0 + jnp.exp(-jnp.abs(margin)))

    # ---- smooth L1 (beta = 1), coord-sum over the middle axis ---------------------
    d = rout_ref[...].astype(jnp.float32) - rlab_ref[...].astype(jnp.float32)  # (M,4,L)
    ad = jnp.abs(d)
    sl1 = jnp.where(ad < 1.0, 0.5 * d * d, ad - 0.5)
    sl1_m = jnp.sum(sl1, axis=1)                     # (M, L) coord-sum (4 sublanes)

    M, L = lab.shape

    # ---- fused reductions ----------------------------------------------------------
    # Stage 1: reduce over anchors (sublane axis) -> three (1, L) rows.
    ce_row = jnp.sum(ce, axis=0, keepdims=True)
    rs_row = jnp.sum(sl1_m * eqf, axis=0, keepdims=True)
    np_row = jnp.sum(eqf, axis=0, keepdims=True)

    # Stage 2: pack the rows into one (3, L) tile with VPU selects (no concat /
    # sublane relayout), then a single cross-lane reduce.
    row_id = jax.lax.broadcasted_iota(jnp.int32, (3, L), 0)
    stacked = jnp.where(row_id == 0, ce_row,
              jnp.where(row_id == 1, rs_row, np_row))           # (3, L)
    col = jnp.sum(stacked, axis=1, keepdims=True)               # (3, 1)

    # Stage 3: split the three partial sums (single-vreg reductions, negligible).
    sel = jax.lax.broadcasted_iota(jnp.int32, (3, 1), 0)
    ce_sum = jnp.sum(jnp.where(sel == 0, col, 0.0))
    rsum = jnp.sum(jnp.where(sel == 1, col, 0.0))
    npos = jnp.sum(jnp.where(sel == 2, col, 0.0))

    # ---- final scalars -------------------------------------------------------------
    closs = ce_sum * (1.0 / float(M * L))            # F.cross_entropy default 'mean'
    rloss = rsum / (npos * 4.0 + 0.0001)             # npos*4 + 1e-4 denominator
    lmbda = lmbda_ref[0]
    loss = closs + lmbda * rloss                     # torch.add(closs, lmbda, rloss)

    # ---- single lane-dense output row: [loss, closs, rloss, 0, ...] ----------------
    lane = jax.lax.broadcasted_iota(jnp.int32, out_ref.shape, 1)
    out_ref[...] = jnp.where(lane == 0, loss,
                   jnp.where(lane == 1, closs,
                   jnp.where(lane == 2, rloss, 0.0)))


@jax.jit
def myloss(coutput, clabel, routput, rlabel, lmbda):
    """Pallas equivalent of Myloss.forward.

    coutput: (bs, 5, 2, 17, 17)
    clabel : (bs, 5, 17, 17) int (values 0/1)
    routput: (bs, 20, 17, 17)
    rlabel : (bs, 20, 17, 17)
    lmbda  : python/JAX scalar
    returns (loss, closs, rloss) scalars
    """
    bs, A, C2, H, W = coutput.shape
    assert C2 == 2
    M = bs * A
    L = H * W
    Creg = routput.shape[1]
    assert Creg == 4 * A

    # Pure reshapes only (contiguous, no relayout copy, no dtype upcast).
    logits = coutput.reshape(M, 2, L)                          # (M, 2, L)
    clab = clabel.astype(jnp.int32).reshape(M, L)              # (M, L)
    rout = routput.reshape(M, 4, L)                            # (M, 4, L)
    rlab = rlabel.reshape(M, 4, L)                             # (M, 4, L)
    lmbda_arr = jnp.asarray(lmbda, dtype=jnp.float32).reshape(1)

    vmem = pl.BlockSpec(memory_space=pltpu.MemorySpace.VMEM)
    smem = pl.BlockSpec(memory_space=pltpu.MemorySpace.SMEM)

    out = pl.pallas_call(
        _myloss_kernel,
        out_shape=jax.ShapeDtypeStruct((1, 128), jnp.float32),
        in_specs=[vmem, vmem, vmem, vmem, smem],
        out_specs=vmem,
    )(logits, clab, rout, rlab, lmbda_arr)

    return out[0, 0], out[0, 1], out[0, 2]


def _myloss_ref(coutput, clabel, routput, rlabel, lmbda):
    """Pure-JAX reference matching the PyTorch semantics."""
    bs, A, _, H, W = coutput.shape
    logits = jnp.transpose(coutput, (0, 2, 1, 3, 4)).astype(jnp.float32)  # (bs,2,5,17,17)
    lse = jax.nn.logsumexp(logits, axis=1)                                # (bs,5,17,17)
    sel = jnp.take_along_axis(logits, clabel[:, None].astype(jnp.int32),
                              axis=1)[:, 0]
    closs = jnp.mean(lse - sel)

    d = routput.astype(jnp.float32) - rlabel.astype(jnp.float32)
    ad = jnp.abs(d)
    sl1 = jnp.where(ad < 1.0, 0.5 * d * d, ad - 0.5)                      # (bs,20,17,17)
    C = rlabel.shape[1]
    eq = (clabel == 1)[:, :, None].astype(jnp.float32)                    # (bs,5,1,17,17)
    rsum = jnp.sum(sl1.reshape(-1, C // 4, 4, H, W) * eq)
    rloss = rsum / (jnp.sum(eq) * 4.0 + 0.0001)
    loss = closs + lmbda * rloss
    return loss, closs, rloss


if __name__ == "__main__":
    key = jax.random.PRNGKey(0)
    k1, k2, k3, k4 = jax.random.split(key, 4)

    bs, A, H, W = 2, 5, 17, 17
    coutput = jax.random.normal(k1, (bs, A, 2, H, W), dtype=jnp.float32)
    clabel = jax.random.randint(k2, (bs, A, H, W), 0, 2, dtype=jnp.int32)
    routput = jax.random.normal(k3, (bs, 4 * A, H, W), dtype=jnp.float32)
    rlabel = jax.random.normal(k4, (bs, 4 * A, H, W), dtype=jnp.float32)
    lmbda = 5.0

    loss, closs, rloss = myloss(coutput, clabel, routput, rlabel, lmbda)
    jax.block_until_ready((loss, closs, rloss))

    # sanity check against a pure-JAX reference
    loss_r, closs_r, rloss_r = _myloss_ref(coutput, clabel, routput, rlabel, lmbda)
    assert jnp.allclose(loss, loss_r, rtol=1e-4, atol=1e-5), (loss, loss_r)
    assert jnp.allclose(closs, closs_r, rtol=1e-4, atol=1e-5), (closs, closs_r)
    assert jnp.allclose(rloss, rloss_r, rtol=1e-4, atol=1e-5), (rloss, rloss_r)

    print("KERNEL_OK")
</pallas_src>

<mosaic_0001>
module attributes {stable_mosaic.version = 11 : i64} {
  func.func @_myloss_kernel(%arg0: memref<10x2x289xf32, #tpu.memory_space<vmem>>, %arg1: memref<10x289xi32, #tpu.memory_space<vmem>>, %arg2: memref<10x4x289xf32, #tpu.memory_space<vmem>>, %arg3: memref<10x4x289xf32, #tpu.memory_space<vmem>>, %arg4: memref<1xf32, #tpu.memory_space<smem>>, %arg5: memref<1x128xf32, #tpu.memory_space<vmem>>) attributes {dimension_semantics = [], scalar_prefetch = 0 : i64, scratch_operands = 0 : i64, tpu.core_type = #tpu.core_type<tc>} {
    %c0 = arith.constant 0 : index
    %c0_0 = arith.constant 0 : index
    %0 = vector.load %arg1[%c0, %c0_0] : memref<10x289xi32, #tpu.memory_space<vmem>>, vector<10x289xi32>
    %c1_i32 = arith.constant 1 : i32
    %1 = vector.broadcast %c1_i32 : i32 to vector<10x289xi32>
    %2 = arith.cmpi eq, %0, %1 : vector<10x289xi32>
    %3 = arith.extui %2 : vector<10x289xi1> to vector<10x289xi32>
    %4 = arith.sitofp %3 : vector<10x289xi32> to vector<10x289xf32>
    %c0_1 = arith.constant 0 : index
    %c0_2 = arith.constant 0 : index
    %c0_3 = arith.constant 0 : index
    %5 = vector.load %arg0[%c0_1, %c0_2, %c0_3] : memref<10x2x289xf32, #tpu.memory_space<vmem>>, vector<10x2x289xf32>
    %6 = vector.extract_strided_slice %5 {offsets = [0, 0, 0], sizes = [10, 1, 289], strides = [1, 1, 1]} : vector<10x2x289xf32> to vector<10x1x289xf32>
    %7 = vector.shape_cast %6 : vector<10x1x289xf32> to vector<10x289xf32>
    %8 = vector.extract_strided_slice %5 {offsets = [0, 1, 0], sizes = [10, 1, 289], strides = [1, 1, 1]} : vector<10x2x289xf32> to vector<10x1x289xf32>
    %9 = vector.shape_cast %8 : vector<10x1x289xf32> to vector<10x289xf32>
    %10 = arith.subf %7, %9 : vector<10x289xf32>
    %11 = arith.subf %9, %7 : vector<10x289xf32>
    %12 = arith.select %2, %10, %11 : vector<10x289xi1>, vector<10x289xf32>
    %cst = arith.constant 0.000000e+00 : f32
    %13 = vector.broadcast %cst : f32 to vector<10x289xf32>
    %14 = arith.maximumf %12, %13 : vector<10x289xf32>
    %15 = math.absf %12 : vector<10x289xf32>
    %cst_4 = arith.constant 0.000000e+00 : f32
    %16 = vector.broadcast %cst_4 : f32 to vector<10x289xf32>
    %17 = arith.subf %16, %15 : vector<10x289xf32>
    %18 = math.exp %17 : vector<10x289xf32>
    %cst_5 = arith.constant 1.000000e+00 : f32
    %19 = vector.broadcast %cst_5 : f32 to vector<10x289xf32>
    %20 = arith.addf %19, %18 : vector<10x289xf32>
    %21 = math.log %20 : vector<10x289xf32>
    %22 = arith.addf %14, %21 : vector<10x289xf32>
    %c0_6 = arith.constant 0 : index
    %c0_7 = arith.constant 0 : index
    %c0_8 = arith.constant 0 : index
    %23 = vector.load %arg2[%c0_6, %c0_7, %c0_8] : memref<10x4x289xf32, #tpu.memory_space<vmem>>, vector<10x4x289xf32>
    %c0_9 = arith.constant 0 : index
    %c0_10 = arith.constant 0 : index
    %c0_11 = arith.constant 0 : index
    %24 = vector.load %arg3[%c0_9, %c0_10, %c0_11] : memref<10x4x289xf32, #tpu.memory_space<vmem>>, vector<10x4x289xf32>
    %25 = arith.subf %23, %24 : vector<10x4x289xf32>
    %26 = math.absf %25 : vector<10x4x289xf32>
    %cst_12 = arith.constant 1.000000e+00 : f32
    %27 = vector.broadcast %cst_12 : f32 to vector<10x4x289xf32>
    %28 = arith.cmpf olt, %26, %27 : vector<10x4x289xf32>
    %cst_13 = arith.constant 5.000000e-01 : f32
    %29 = vector.broadcast %cst_13 : f32 to vector<10x4x289xf32>
    %30 = arith.mulf %29, %25 : vector<10x4x289xf32>
    %31 = arith.mulf %30, %25 : vector<10x4x289xf32>
    %cst_14 = arith.constant 5.000000e-01 : f32
    %32 = vector.broadcast %cst_14 : f32 to vector<10x4x289xf32>
    %33 = arith.subf %26, %32 : vector<10x4x289xf32>
    %34 = arith.select %28, %31, %33 : vector<10x4x289xi1>, vector<10x4x289xf32>
    %cst_15 = arith.constant dense<0.000000e+00> : vector<10x289xf32>
    %35 = vector.multi_reduction <add>, %34, %cst_15 [1] : vector<10x4x289xf32> to vector<10x289xf32>
    %cst_16 = arith.constant dense<0.000000e+00> : vector<289xf32>
    %36 = vector.multi_reduction <add>, %22, %cst_16 [0] : vector<10x289xf32> to vector<289xf32>
    %37 = vector.shape_cast %36 : vector<289xf32> to vector<1x289xf32>
    %38 = arith.mulf %35, %4 : vector<10x289xf32>
    %cst_17 = arith.constant dense<0.000000e+00> : vector<289xf32>
    %39 = vector.multi_reduction <add>, %38, %cst_17 [0] : vector<10x289xf32> to vector<289xf32>
    %40 = vector.shape_cast %39 : vector<289xf32> to vector<1x289xf32>
    %cst_18 = arith.constant dense<0.000000e+00> : vector<289xf32>
    %41 = vector.multi_reduction <add>, %4, %cst_18 [0] : vector<10x289xf32> to vector<289xf32>
    %42 = vector.shape_cast %41 : vector<289xf32> to vector<1x289xf32>
    %43 = tpu.iota {dimensions = array<i32: 0>} : vector<3x289xi32>
    %c0_i32 = arith.constant 0 : i32
    %44 = vector.broadcast %c0_i32 : i32 to vector<3x289xi32>
    %45 = arith.cmpi eq, %43, %44 : vector<3x289xi32>
    %c1_i32_19 = arith.constant 1 : i32
    %46 = vector.broadcast %c1_i32_19 : i32 to vector<3x289xi32>
    %47 = arith.cmpi eq, %43, %46 : vector<3x289xi32>
    %48 = vector.shape_cast %40 : vector<1x289xf32> to vector<1x289xf32>
    %49 = vector.broadcast %48 : vector<1x289xf32> to vector<3x289xf32>
    %50 = vector.shape_cast %42 : vector<1x289xf32> to vector<1x289xf32>
    %51 = vector.broadcast %50 : vector<1x289xf32> to vector<3x289xf32>
    %52 = arith.select %47, %49, %51 : vector<3x289xi1>, vector<3x289xf32>
    %53 = vector.shape_cast %37 : vector<1x289xf32> to vector<1x289xf32>
    %54 = vector.broadcast %53 : vector<1x289xf32> to vector<3x289xf32>
    %55 = arith.select %45, %54, %52 : vector<3x289xi1>, vector<3x289xf32>
    %cst_20 = arith.constant dense<0.000000e+00> : vector<3xf32>
    %56 = vector.multi_reduction <add>, %55, %cst_20 [1] : vector<3x289xf32> to vector<3xf32>
    %57 = vector.shape_cast %56 : vector<3xf32> to vector<3x1xf32>
    %58 = tpu.iota {dimensions = array<i32: 0>} : vector<3x1xi32>
    %c0_i32_21 = arith.constant 0 : i32
    %59 = vector.broadcast %c0_i32_21 : i32 to vector<3x1xi32>
    %60 = arith.cmpi eq, %58, %59 : vector<3x1xi32>
    %cst_22 = arith.constant 0.000000e+00 : f32
    %61 = vector.broadcast %cst_22 : f32 to vector<3x1xf32>
    %62 = arith.select %60, %57, %61 : vector<3x1xi1>, vector<3x1xf32>
    %63 = vector.shape_cast %62 : vector<3x1xf32> to vector<1x3x1xf32>
    %cst_23 = arith.constant dense<0.000000e+00> : vector<1xf32>
    %64 = vector.multi_reduction <add>, %63, %cst_23 [1, 2] : vector<1x3x1xf32> to vector<1xf32>
    %65 = vector.shape_cast %64 : vector<1xf32> to vector<1x1x1xf32>
    %66 = vector.extract %65[0, 0, 0] : f32 from vector<1x1x1xf32>
    %c1_i32_24 = arith.constant 1 : i32
    %67 = vector.broadcast %c1_i32_24 : i32 to vector<3x1xi32>
    %68 = arith.cmpi eq, %58, %67 : vector<3x1xi32>
    %cst_25 = arith.constant 0.000000e+00 : f32
    %69 = vector.broadcast %cst_25 : f32 to vector<3x1xf32>
    %70 = arith.select %68, %57, %69 : vector<3x1xi1>, vector<3x1xf32>
    %71 = vector.shape_cast %70 : vector<3x1xf32> to vector<1x3x1xf32>
    %cst_26 = arith.constant dense<0.000000e+00> : vector<1xf32>
    %72 = vector.multi_reduction <add>, %71, %cst_26 [1, 2] : vector<1x3x1xf32> to vector<1xf32>
    %73 = vector.shape_cast %72 : vector<1xf32> to vector<1x1x1xf32>
    %74 = vector.extract %73[0, 0, 0] : f32 from vector<1x1x1xf32>
    %c2_i32 = arith.constant 2 : i32
    %75 = vector.broadcast %c2_i32 : i32 to vector<3x1xi32>
    %76 = arith.cmpi eq, %58, %75 : vector<3x1xi32>
    %cst_27 = arith.constant 0.000000e+00 : f32
    %77 = vector.broadcast %cst_27 : f32 to vector<3x1xf32>
    %78 = arith.select %76, %57, %77 : vector<3x1xi1>, vector<3x1xf32>
    %79 = vector.shape_cast %78 : vector<3x1xf32> to vector<1x3x1xf32>
    %cst_28 = arith.constant dense<0.000000e+00> : vector<1xf32>
    %80 = vector.multi_reduction <add>, %79, %cst_28 [1, 2] : vector<1x3x1xf32> to vector<1xf32>
    %81 = vector.shape_cast %80 : vector<1xf32> to vector<1x1x1xf32>
    %82 = vector.extract %81[0, 0, 0] : f32 from vector<1x1x1xf32>
    %cst_29 = arith.constant 3.46020766E-4 : f32
    %83 = arith.mulf %66, %cst_29 : f32
    %cst_30 = arith.constant 4.000000e+00 : f32
    %84 = arith.mulf %82, %cst_30 : f32
    %cst_31 = arith.constant 9.99999974E-5 : f32
    %85 = arith.addf %84, %cst_31 : f32
    %86 = arith.divf %74, %85 : f32
    %c0_32 = arith.constant 0 : index
    %87 = memref.load %arg4[%c0_32] : memref<1xf32, #tpu.memory_space<smem>>
    %88 = arith.mulf %87, %86 : f32
    %89 = arith.addf %83, %88 : f32
    %90 = tpu.iota {dimensions = array<i32: 1>} : vector<1x128xi32>
    %c0_i32_33 = arith.constant 0 : i32
    %91 = vector.broadcast %c0_i32_33 : i32 to vector<1x128xi32>
    %92 = arith.cmpi eq, %90, %91 : vector<1x128xi32>
    %c1_i32_34 = arith.constant 1 : i32
    %93 = vector.broadcast %c1_i32_34 : i32 to vector<1x128xi32>
    %94 = arith.cmpi eq, %90, %93 : vector<1x128xi32>
    %c2_i32_35 = arith.constant 2 : i32
    %95 = vector.broadcast %c2_i32_35 : i32 to vector<1x128xi32>
    %96 = arith.cmpi eq, %90, %95 : vector<1x128xi32>
    %cst_36 = arith.constant 0.000000e+00 : f32
    %97 = vector.broadcast %86 : f32 to vector<1x128xf32>
    %98 = vector.broadcast %cst_36 : f32 to vector<1x128xf32>
    %99 = arith.select %96, %97, %98 : vector<1x128xi1>, vector<1x128xf32>
    %100 = vector.broadcast %83 : f32 to vector<1x128xf32>
    %101 = arith.select %94, %100, %99 : vector<1x128xi1>, vector<1x128xf32>
    %102 = vector.broadcast %89 : f32 to vector<1x128xf32>
    %103 = arith.select %92, %102, %101 : vector<1x128xi1>, vector<1x128xf32>
    %c0_37 = arith.constant 0 : index
    %c0_38 = arith.constant 0 : index
    %104 = vector.load %arg5[%c0_37, %c0_38] : memref<1x128xf32, #tpu.memory_space<vmem>>, vector<1x128xf32>
    tpu.vector_store %arg5[%c0_37, %c0_38], %103 {strides = array<i32>} : memref<1x128xf32, #tpu.memory_space<vmem>>, vector<1x128xf32>,
    return
  }
}

</mosaic_0001>

<llo_original>
// kernel: myloss.1
$region0: #{myloss.1}
  #allocation0 [shape = 'u32[]', space=smem, size = 0x4, offset = 0x4, fixed_abs, tag = 'smem constant byte address 0x4 - core index']
  #allocation1 [shape = 'u32[144,128]{1,0:T(1,128)}', space=vmem, size = 0x12000, scoped, tag = 'internal scratch']
  #allocation2 [shape = 'f32[1]{0:T(128)S(6)}', space=smem, size = 0x200, scoped, tag = 'scoped memory for myloss.1']
  %s0 = inlined_call_operand.vmem [shape: f32[10,2,289], index: 0, kind: input, shape index: {}]
  %s1 = inlined_call_operand.vmem [shape: s32[10,289], index: 1, kind: input, shape index: {}]
  %s2 = inlined_call_operand.vmem [shape: f32[10,4,289], index: 2, kind: input, shape index: {}]
  %s3 = inlined_call_operand.vmem [shape: f32[10,4,289], index: 3, kind: input, shape index: {}]
  %s4 = inlined_call_operand.<no memory space> [shape: f32[1], index: 4, kind: input, shape index: {}]
  %s5 = inlined_call_operand.vmem [shape: f32[1,128], index: 5, kind: output, shape index: {}]
  %s6 = sld [smem:[#allocation0]]
  $region30: #{myloss.1} parent=0
    _
  %s8 = ssub.s32 1, %s6
  %s9 = scalar_select 0, %s8, %s6
  %10 = sst [smem:[#allocation2]] %s4
  // Predicated region
  $region2: #{myloss.1} parent=0 // pred_check
    _
  $region3: #{myloss.1} parent=0 // pred_check_branch
    %12 = sbr.rel (0) target = $region5
  $region4: #{myloss.1} parent=0 // pred_region
    _
  $region5: #{myloss.1} parent=0 // pred_fallthru
    _
  // Predicated region
  $region6: #{myloss.1} parent=0 // pred_check
    _
  $region7: #{myloss.1} parent=0 // pred_check_branch
    %14 = sbr.rel (0) target = $region9
  $region8: #{myloss.1} parent=0 // pred_region
    _
  $region9: #{myloss.1} parent=0 // pred_fallthru
    _
  // Predicated region
  $region10: #{myloss.1} parent=0 // pred_check
    _
  $region11: #{myloss.1} parent=0 // pred_check_branch
    %16 = sbr.rel (0) target = $region13
  $region12: #{myloss.1} parent=0 // pred_region
    _
  $region13: #{myloss.1} parent=0 // pred_fallthru
    _
  // Predicated region
  $region14: #{myloss.1} parent=0 // pred_check
    _
  $region15: #{myloss.1} parent=0 // pred_check_branch
    %18 = sbr.rel (0) target = $region17
  $region16: #{myloss.1} parent=0 // pred_region
    _
  $region17: #{myloss.1} parent=0 // pred_fallthru
    _
  // Predicated region
  $region18: #{myloss.1} parent=0 // pred_check
    _
  $region19: #{myloss.1} parent=0 // pred_check_branch
    %20 = sbr.rel (0) target = $region21
  $region20: #{myloss.1} parent=0 // pred_region
    _
  $region21: #{myloss.1} parent=0 // pred_fallthru
    _
  %v21 = vld [vmem:[%s1] sm:$0xff]
  %v22 = vld [vmem:[%s1 + $0x8] sm:$0xff]
  %v23 = vld [vmem:[%s1 + $0x10] sm:$0xff]
  %v24 = vld [vmem:[%s1 + $0x18] sm:$0x3]
  %v25 = vld [vmem:[%s1 + $0x20] sm:$0x3]
  %v26 = vld [vmem:[%s1 + $0x28] sm:$0x3]
  %vm27 = vcmp.eq.s32.totalorder %v21, 1
  %vm28 = vcmp.eq.s32.totalorder %v22, 1
  %vm29 = vcmp.eq.s32.totalorder %v23, 1
  %vm30 = vcmp.eq.s32.totalorder %v24, 1
  %vm31 = vcmp.eq.s32.totalorder %v25, 1
  %vm32 = vcmp.eq.s32.totalorder %v26, 1
  %v33 = vsel %vm27, 1, 0
  %v34 = vsel %vm28, 1, 0
  %v35 = vsel %vm29, 1, 0
  %v36 = vsel %vm30, 1, 0
  %v37 = vsel %vm31, 1, 0
  %v38 = vsel %vm32, 1, 0
  %v39 = vcvt.s32.f32 %v33
  %v40 = vcvt.s32.f32 %v34
  %v41 = vcvt.s32.f32 %v35
  %v42 = vcvt.s32.f32 %v36
  %v43 = vcvt.s32.f32 %v37
  %v44 = vcvt.s32.f32 %v38
  %v45 = vld [vmem:[%s0] sm:$0x3f]
  %v46 = vld [vmem:[%s0 + $0x6] sm:$0x3f]
  %v47 = vld [vmem:[%s0 + $0xc] sm:$0x3f]
  %v48 = vld [vmem:[%s0 + $0x12] sm:$0x3f]
  %v49 = vld [vmem:[%s0 + $0x18] sm:$0x3f]
  %v50 = vld [vmem:[%s0 + $0x1e] sm:$0x3f]
  %v51 = vld [vmem:[%s0 + $0x24] sm:$0x3f]
  %v52 = vld [vmem:[%s0 + $0x2a] sm:$0x3f]
  %v53 = vld [vmem:[%s0 + $0x30] sm:$0x3f]
  %v54 = vld [vmem:[%s0 + $0x36] sm:$0x3f]
  %v65 = vrot.slane %v45, 7
  %v66 = vrot.slane %v65, 2
  %v67 = vrot.slane %v46, 7
  %v68 = vrot.slane %v67, 2
  %v69 = vrot.slane %v47, 7
  %v70 = vrot.slane %v69, 2
  %v71 = vrot.slane %v48, 7
  %v72 = vrot.slane %v71, 2
  %v73 = vrot.slane %v49, 7
  %v74 = vrot.slane %v73, 2
  %v75 = vrot.slane %v50, 7
  %v76 = vrot.slane %v75, 2
  %v77 = vrot.slane %v51, 7
  %v78 = vrot.slane %v77, 2
  %v79 = vrot.slane %v52, 7
  %v80 = vrot.slane %v79, 2
  %v81 = vrot.slane %v53, 7
  %v82 = vrot.slane %v81, 2
  %v83 = vrot.slane %v54, 7
  %v84 = vrot.slane %v83, 2
  %v95 = vsub.f32 %v45, %v66
  %v96 = vsub.f32 %v46, %v68
  %v97 = vsub.f32 %v47, %v70
  %v98 = vsub.f32 %v48, %v72
  %v99 = vsub.f32 %v49, %v74
  %v100 = vsub.f32 %v50, %v76
  %v101 = vsub.f32 %v51, %v78
  %v102 = vsub.f32 %v52, %v80
  %v103 = vsub.f32 %v53, %v82
  %v104 = vsub.f32 %v54, %v84
  %v115 = vsub.f32 %v45, %v65
  %v116 = vsub.f32 %v46, %v67
  %v117 = vsub.f32 %v47, %v69
  %v118 = vsub.f32 %v48, %v71
  %v119 = vsub.f32 %v49, %v73
  %v120 = vsub.f32 %v50, %v75
  %v121 = vsub.f32 %v51, %v77
  %v122 = vsub.f32 %v52, %v79
  %v123 = vsub.f32 %v53, %v81
  %v124 = vsub.f32 %v54, %v83
  %v135 = vlaneseq
  %v136 = vshrl.u32 %v135, 7
  %v137 = vsub.s32 0, %v136
  %v138 = vrot.slane %v95, %v137
  %v139 = vlaneseq
  %v140 = vshrl.u32 %v139, 7
  %v141 = vsub.s32 2, %v140
  %v142 = vrot.slane %v95, %v141
  %v143 = vlaneseq
  %v144 = vshrl.u32 %v143, 7
  %v145 = vsub.s32 4, %v144
  %v146 = vrot.slane %v95, %v145
  %v147 = vlaneseq
  %v148 = vshrl.u32 %v147, 7
  %v149 = vsub.s32 0, %v148
  %v150 = vrot.slane %v96, %v149
  %v151 = vlaneseq
  %v152 = vshrl.u32 %v151, 7
  %v153 = vsub.s32 2, %v152
  %v154 = vrot.slane %v96, %v153
  %v155 = vlaneseq
  %v156 = vshrl.u32 %v155, 7
  %v157 = vsub.s32 4, %v156
  %v158 = vrot.slane %v96, %v157
  %v159 = vlaneseq
  %v160 = vshrl.u32 %v159, 7
  %v161 = vsub.s32 0, %v160
  %v162 = vrot.slane %v97, %v161
  %v163 = vlaneseq
  %v164 = vshrl.u32 %v163, 7
  %v165 = vsub.s32 2, %v164
  %v166 = vrot.slane %v97, %v165
  %v167 = vlaneseq
  %v168 = vshrl.u32 %v167, 7
  %v169 = vsub.s32 4, %v168
  %v170 = vrot.slane %v97, %v169
  %v171 = vlaneseq
  %v172 = vshrl.u32 %v171, 7
  %v173 = vsub.s32 0, %v172
  %v174 = vrot.slane %v98, %v173
  %v175 = vlaneseq
  %v176 = vshrl.u32 %v175, 7
  %v177 = vsub.s32 2, %v176
  %v178 = vrot.slane %v98, %v177
  %v179 = vlaneseq
  %v180 = vshrl.u32 %v179, 7
  %v181 = vsub.s32 4, %v180
  %v182 = vrot.slane %v98, %v181
  %v183 = vlaneseq
  %v184 = vshrl.u32 %v183, 7
  %v185 = vsub.s32 0, %v184
  %v186 = vrot.slane %v99, %v185
  %v187 = vlaneseq
  %v188 = vshrl.u32 %v187, 7
  %v189 = vsub.s32 2, %v188
  %v190 = vrot.slane %v99, %v189
  %v191 = vlaneseq
  %v192 = vshrl.u32 %v191, 7
  %v193 = vsub.s32 4, %v192
  %v194 = vrot.slane %v99, %v193
  %v195 = vlaneseq
  %v196 = vshrl.u32 %v195, 7
  %v197 = vsub.s32 0, %v196
  %v198 = vrot.slane %v100, %v197
  %v199 = vlaneseq
  %v200 = vshrl.u32 %v199, 7
  %v201 = vsub.s32 2, %v200
  %v202 = vrot.slane %v100, %v201
  %v203 = vlaneseq
  %v204 = vshrl.u32 %v203, 7
  %v205 = vsub.s32 4, %v204
  %v206 = vrot.slane %v100, %v205
  %v207 = vlaneseq
  %v208 = vshrl.u32 %v207, 7
  %v209 = vsub.s32 0, %v208
  %v210 = vrot.slane %v101, %v209
  %v211 = vlaneseq
  %v212 = vshrl.u32 %v211, 7
  %v213 = vsub.s32 2, %v212
  %v214 = vrot.slane %v101, %v213
  %v215 = vlaneseq
  %v216 = vshrl.u32 %v215, 7
  %v217 = vsub.s32 4, %v216
  %v218 = vrot.slane %v101, %v217
  %v219 = vlaneseq
  %v220 = vshrl.u32 %v219, 7
  %v221 = vsub.s32 0, %v220
  %v222 = vrot.slane %v102, %v221
  %v223 = vlaneseq
  %v224 = vshrl.u32 %v223, 7
  %v225 = vsub.s32 2, %v224
  %v226 = vrot.slane %v102, %v225
  %v227 = vlaneseq
  %v228 = vshrl.u32 %v227, 7
  %v229 = vsub.s32 4, %v228
  %v230 = vrot.slane %v102, %v229
  %v231 = vlaneseq
  %v232 = vshrl.u32 %v231, 7
  %v233 = vsub.s32 0, %v232
  %v234 = vrot.slane %v103, %v233
  %v235 = vlaneseq
  %v236 = vshrl.u32 %v235, 7
  %v237 = vsub.s32 2, %v236
  %v238 = vrot.slane %v103, %v237
  %v239 = vlaneseq
  %v240 = vshrl.u32 %v239, 7
  %v241 = vsub.s32 4, %v240
  %v242 = vrot.slane %v103, %v241
  %v243 = vlaneseq
  %v244 = vshrl.u32 %v243, 7
  %v245 = vsub.s32 0, %v244
  %v246 = vrot.slane %v104, %v245
  %v247 = vlaneseq
  %v248 = vshrl.u32 %v247, 7
  %v249 = vsub.s32 2, %v248
  %v250 = vrot.slane %v104, %v249
  %v251 = vlaneseq
  %v252 = vshrl.u32 %v251, 7
  %v253 = vsub.s32 4, %v252
  %v254 = vrot.slane %v104, %v253
  %vm255 = vcmask 1041409
  %v256 = vsel %vm255, %v150, %v138
  %vm257 = vcmask 1042434
  %v258 = vsel %vm257, %v162, %v256
  %vm259 = vcmask 1043459
  %v260 = vsel %vm259, %v174, %v258
  %vm261 = vcmask 1044484
  %v262 = vsel %vm261, %v186, %v260
  %vm263 = vcmask 1045509
  %v264 = vsel %vm263, %v198, %v262
  %vm265 = vcmask 1046534
  %v266 = vsel %vm265, %v210, %v264
  %vm267 = vcmask 1047559
  %v268 = vsel %vm267, %v222, %v266
  %v269 = vsel %vm255, %v154, %v142
  %v270 = vsel %vm257, %v166, %v269
  %v271 = vsel %vm259, %v178, %v270
  %v272 = vsel %vm261, %v190, %v271
  %v273 = vsel %vm263, %v202, %v272
  %v274 = vsel %vm265, %v214, %v273
  %v275 = vsel %vm267, %v226, %v274
  %v276 = vsel %vm255, %v158, %v146
  %v277 = vsel %vm257, %v170, %v276
  %v278 = vsel %vm259, %v182, %v277
  %v279 = vsel %vm261, %v194, %v278
  %v280 = vsel %vm263, %v206, %v279
  %v281 = vsel %vm265, %v218, %v280
  %v282 = vsel %vm267, %v230, %v281
  %v283 = vsel %vm255, %v246, %v234
  %v284 = vsel %vm255, %v250, %v238
  %v285 = vsel %vm255, %v254, %v242
  %v302 = vlaneseq
  %v303 = vshrl.u32 %v302, 7
  %v304 = vsub.s32 1, %v303
  %v305 = vrot.slane %v115, %v304
  %v306 = vlaneseq
  %v307 = vshrl.u32 %v306, 7
  %v308 = vsub.s32 3, %v307
  %v309 = vrot.slane %v115, %v308
  %v310 = vlaneseq
  %v311 = vshrl.u32 %v310, 7
  %v312 = vsub.s32 5, %v311
  %v313 = vrot.slane %v115, %v312
  %v314 = vlaneseq
  %v315 = vshrl.u32 %v314, 7
  %v316 = vsub.s32 1, %v315
  %v317 = vrot.slane %v116, %v316
  %v318 = vlaneseq
  %v319 = vshrl.u32 %v318, 7
  %v320 = vsub.s32 3, %v319
  %v321 = vrot.slane %v116, %v320
  %v322 = vlaneseq
  %v323 = vshrl.u32 %v322, 7
  %v324 = vsub.s32 5, %v323
  %v325 = vrot.slane %v116, %v324
  %v326 = vlaneseq
  %v327 = vshrl.u32 %v326, 7
  %v328 = vsub.s32 1, %v327
  %v329 = vrot.slane %v117, %v328
  %v330 = vlaneseq
  %v331 = vshrl.u32 %v330, 7
  %v332 = vsub.s32 3, %v331
  %v333 = vrot.slane %v117, %v332
  %v334 = vlaneseq
  %v335 = vshrl.u32 %v334, 7
  %v336 = vsub.s32 5, %v335
  %v337 = vrot.slane %v117, %v336
  %v338 = vlaneseq
  %v339 = vshrl.u32 %v338, 7
  %v340 = vsub.s32 1, %v339
  %v341 = vrot.slane %v118, %v340
  %v342 = vlaneseq
  %v343 = vshrl.u32 %v342, 7
  %v344 = vsub.s32 3, %v343
  %v345 = vrot.slane %v118, %v344
  %v346 = vlaneseq
  %v347 = vshrl.u32 %v346, 7
  %v348 = vsub.s32 5, %v347
  %v349 = vrot.slane %v118, %v348
  %v350 = vlaneseq
  %v351 = vshrl.u32 %v350, 7
  %v352 = vsub.s32 1, %v351
  %v353 = vrot.slane %v119, %v352
  %v354 = vlaneseq
  %v355 = vshrl.u32 %v354, 7
  %v356 = vsub.s32 3, %v355
  %v357 = vrot.slane %v119, %v356
  %v358 = vlaneseq
  %v359 = vshrl.u32 %v358, 7
  %v360 = vsub.s32 5, %v359
  %v361 = vrot.slane %v119, %v360
  %v362 = vlaneseq
  %v363 = vshrl.u32 %v362, 7
  %v364 = vsub.s32 1, %v363
  %v365 = vrot.slane %v120, %v364
  %v366 = vlaneseq
  %v367 = vshrl.u32 %v366, 7
  %v368 = vsub.s32 3, %v367
  %v369 = vrot.slane %v120, %v368
  %v370 = vlaneseq
  %v371 = vshrl.u32 %v370, 7
  %v372 = vsub.s32 5, %v371
  %v373 = vrot.slane %v120, %v372
  %v374 = vlaneseq
  %v375 = vshrl.u32 %v374, 7
  %v376 = vsub.s32 1, %v375
  %v377 = vrot.slane %v121, %v376
  %v378 = vlaneseq
  %v379 = vshrl.u32 %v378, 7
  %v380 = vsub.s32 3, %v379
  %v381 = vrot.slane %v121, %v380
  %v382 = vlaneseq
  %v383 = vshrl.u32 %v382, 7
  %v384 = vsub.s32 5, %v383
  %v385 = vrot.slane %v121, %v384
  %v386 = vlaneseq
  %v387 = vshrl.u32 %v386, 7
  %v388 = vsub.s32 1, %v387
  %v389 = vrot.slane %v122, %v388
  %v390 = vlaneseq
  %v391 = vshrl.u32 %v390, 7
  %v392 = vsub.s32 3, %v391
  %v393 = vrot.slane %v122, %v392
  %v394 = vlaneseq
  %v395 = vshrl.u32 %v394, 7
  %v396 = vsub.s32 5, %v395
  %v397 = vrot.slane %v122, %v396
  %v398 = vlaneseq
  %v399 = vshrl.u32 %v398, 7
  %v400 = vsub.s32 1, %v399
  %v401 = vrot.slane %v123, %v400
  %v402 = vlaneseq
  %v403 = vshrl.u32 %v402, 7
  %v404 = vsub.s32 3, %v403
  %v405 = vrot.slane %v123, %v404
  %v406 = vlaneseq
  %v407 = vshrl.u32 %v406, 7
  %v408 = vsub.s32 5, %v407
  %v409 = vrot.slane %v123, %v408
  %v410 = vlaneseq
  %v411 = vshrl.u32 %v410, 7
  %v412 = vsub.s32 1, %v411
  %v413 = vrot.slane %v124, %v412
  %v414 = vlaneseq
  %v415 = vshrl.u32 %v414, 7
  %v416 = vsub.s32 3, %v415
  %v417 = vrot.slane %v124, %v416
  %v418 = vlaneseq
  %v419 = vshrl.u32 %v418, 7
  %v420 = vsub.s32 5, %v419
  %v421 = vrot.slane %v124, %v420
  %v422 = vsel %vm255, %v317, %v305
  %v423 = vsel %vm257, %v329, %v422
  %v424 = vsel %vm259, %v341, %v423
  %v425 = vsel %vm261, %v353, %v424
  %v426 = vsel %vm263, %v365, %v425
  %v427 = vsel %vm265, %v377, %v426
  %v428 = vsel %vm267, %v389, %v427
  %v429 = vsel %vm255, %v321, %v309
  %v430 = vsel %vm257, %v333, %v429
  %v431 = vsel %vm259, %v345, %v430
  %v432 = vsel %vm261, %v357, %v431
  %v433 = vsel %vm263, %v369, %v432
  %v434 = vsel %vm265, %v381, %v433
  %v435 = vsel %vm267, %v393, %v434
  %v436 = vsel %vm255, %v325, %v313
  %v437 = vsel %vm257, %v337, %v436
  %v438 = vsel %vm259, %v349, %v437
  %v439 = vsel %vm261, %v361, %v438
  %v440 = vsel %vm263, %v373, %v439
  %v441 = vsel %vm265, %v385, %v440
  %v442 = vsel %vm267, %v397, %v441
  %v443 = vsel %vm255, %v413, %v401
  %v444 = vsel %vm255, %v417, %v405
  %v445 = vsel %vm255, %v421, %v409
  %v452 = vsel %vm27, %v268, %v428
  %v453 = vsel %vm28, %v275, %v435
  %v454 = vsel %vm29, %v282, %v442
  %v455 = vsel %vm30, %v283, %v443
  %v456 = vsel %vm31, %v284, %v444
  %v457 = vsel %vm32, %v285, %v445
  %v458 = vmax.f32 %v452, 0.0
  %v459 = vmax.f32 %v453, 0.0
  %v460 = vmax.f32 %v454, 0.0
  %v461 = vmax.f32 %v455, 0.0
  %v462 = vmax.f32 %v456, 0.0
  %v463 = vmax.f32 %v457, 0.0
  %v464 = vand.u32 2147483647, %v452
  %v465 = vand.u32 2147483647, %v453
  %v466 = vand.u32 2147483647, %v454
  %v467 = vand.u32 2147483647, %v455
  %v468 = vand.u32 2147483647, %v456
  %v469 = vand.u32 2147483647, %v457
  %v470 = vsub.f32 0.0, %v464
  %v471 = vsub.f32 0.0, %v465
  %v472 = vsub.f32 0.0, %v466
  %v473 = vsub.f32 0.0, %v467
  %v474 = vsub.f32 0.0, %v468
  %v475 = vsub.f32 0.0, %v469
  %v476 = vmul.f32 %v470, 1.442695
  %v477 = vpow.pop %v476
  %v478 = vmul.f32 %v471, 1.442695
  %v479 = vpow.pop %v478
  %v480 = vmul.f32 %v472, 1.442695
  %v481 = vpow.pop %v480
  %v482 = vmul.f32 %v473, 1.442695
  %v483 = vpow.pop %v482
  %v484 = vmul.f32 %v474, 1.442695
  %v485 = vpow.pop %v484
  %v486 = vmul.f32 %v475, 1.442695
  %v487 = vpow.pop %v486
  %v488 = vadd.f32 %v477, 1.0
  %v489 = vadd.f32 %v479, 1.0
  %v490 = vadd.f32 %v481, 1.0
  %v491 = vadd.f32 %v483, 1.0
  %v492 = vadd.f32 %v485, 1.0
  %v493 = vadd.f32 %v487, 1.0
  %v494 = vlog2.pop %v488
  %v495 = vmul.f32 %v494, 0.6931472
  %v496 = vlog2.pop %v489
  %v497 = vmul.f32 %v496, 0.6931472
  %v498 = vlog2.pop %v490
  %v499 = vmul.f32 %v498, 0.6931472
  %v500 = vlog2.pop %v491
  %v501 = vmul.f32 %v500, 0.6931472
  %v502 = vlog2.pop %v492
  %v503 = vmul.f32 %v502, 0.6931472
  %v504 = vlog2.pop %v493
  %v505 = vmul.f32 %v504, 0.6931472
  %v506 = vadd.f32 %v458, %v495
  %v507 = vadd.f32 %v459, %v497
  %v508 = vadd.f32 %v460, %v499
  %v509 = vadd.f32 %v461, %v501
  %v510 = vadd.f32 %v462, %v503
  %v511 = vadd.f32 %v463, %v505
  %v512 = vld [vmem:[%s2] sm:$0xff]
  %v513 = vld [vmem:[%s2 + $0x8] sm:$0xf]
  %v514 = vld [vmem:[%s2 + $0xc] sm:$0xff]
  %v515 = vld [vmem:[%s2 + $0x14] sm:$0xf]
  %v516 = vld [vmem:[%s2 + $0x18] sm:$0xff]
  %v517 = vld [vmem:[%s2 + $0x20] sm:$0xf]
  %v518 = vld [vmem:[%s2 + $0x24] sm:$0xff]
  %v519 = vld [vmem:[%s2 + $0x2c] sm:$0xf]
  %v520 = vld [vmem:[%s2 + $0x30] sm:$0xff]
  %v521 = vld [vmem:[%s2 + $0x38] sm:$0xf]
  %v522 = vld [vmem:[%s2 + $0x3c] sm:$0xff]
  %v523 = vld [vmem:[%s2 + $0x44] sm:$0xf]
  %v524 = vld [vmem:[%s2 + $0x48] sm:$0xff]
  %v525 = vld [vmem:[%s2 + $0x50] sm:$0xf]
  %v526 = vld [vmem:[%s2 + $0x54] sm:$0xff]
  %v527 = vld [vmem:[%s2 + $0x5c] sm:$0xf]
  %v528 = vld [vmem:[%s2 + $0x60] sm:$0xff]
  %v529 = vld [vmem:[%s2 + $0x68] sm:$0xf]
  %v530 = vld [vmem:[%s2 + $0x6c] sm:$0xff]
  %v531 = vld [vmem:[%s2 + $0x74] sm:$0xf]
  %v532 = vld [vmem:[%s3] sm:$0xff]
  %v533 = vld [vmem:[%s3 + $0x8] sm:$0xf]
  %v534 = vld [vmem:[%s3 + $0xc] sm:$0xff]
  %v535 = vld [vmem:[%s3 + $0x14] sm:$0xf]
  %v536 = vld [vmem:[%s3 + $0x18] sm:$0xff]
  %v537 = vld [vmem:[%s3 + $0x20] sm:$0xf]
  %v538 = vld [vmem:[%s3 + $0x24] sm:$0xff]
  %v539 = vld [vmem:[%s3 + $0x2c] sm:$0xf]
  %v540 = vld [vmem:[%s3 + $0x30] sm:$0xff]
  %v541 = vld [vmem:[%s3 + $0x38] sm:$0xf]
  %v542 = vld [vmem:[%s3 + $0x3c] sm:$0xff]
  %v543 = vld [vmem:[%s3 + $0x44] sm:$0xf]
  %v544 = vld [vmem:[%s3 + $0x48] sm:$0xff]
  %v545 = vld [vmem:[%s3 + $0x50] sm:$0xf]
  %v546 = vld [vmem:[%s3 + $0x54] sm:$0xff]
  %v547 = vld [vmem:[%s3 + $0x5c] sm:$0xf]
  %v548 = vld [vmem:[%s3 + $0x60] sm:$0xff]
  %v549 = vld [vmem:[%s3 + $0x68] sm:$0xf]
  %v550 = vld [vmem:[%s3 + $0x6c] sm:$0xff]
  %v551 = vld [vmem:[%s3 + $0x74] sm:$0xf]
  %v552 = vsub.f32 %v512, %v532
  %v553 = vsub.f32 %v513, %v533
  %v554 = vsub.f32 %v514, %v534
  %v555 = vsub.f32 %v515, %v535
  %v556 = vsub.f32 %v516, %v536
  %v557 = vsub.f32 %v517, %v537
  %v558 = vsub.f32 %v518, %v538
  %v559 = vsub.f32 %v519, %v539
  %v560 = vsub.f32 %v520, %v540
  %v561 = vsub.f32 %v521, %v541
  %v562 = vsub.f32 %v522, %v542
  %v563 = vsub.f32 %v523, %v543
  %v564 = vsub.f32 %v524, %v544
  %v565 = vsub.f32 %v525, %v545
  %v566 = vsub.f32 %v526, %v546
  %v567 = vsub.f32 %v527, %v547
  %v568 = vsub.f32 %v528, %v548
  %v569 = vsub.f32 %v529, %v549
  %v570 = vsub.f32 %v530, %v550
  %v571 = vsub.f32 %v531, %v551
  %v572 = vand.u32 2147483647, %v552
  %v573 = vand.u32 2147483647, %v553
  %v574 = vand.u32 2147483647, %v554
  %v575 = vand.u32 2147483647, %v555
  %v576 = vand.u32 2147483647, %v556
  %v577 = vand.u32 2147483647, %v557
  %v578 = vand.u32 2147483647, %v558
  %v579 = vand.u32 2147483647, %v559
  %v580 = vand.u32 2147483647, %v560
  %v581 = vand.u32 2147483647, %v561
  %v582 = vand.u32 2147483647, %v562
  %v583 = vand.u32 2147483647, %v563
  %v584 = vand.u32 2147483647, %v564
  %v585 = vand.u32 2147483647, %v565
  %v586 = vand.u32 2147483647, %v566
  %v587 = vand.u32 2147483647, %v567
  %v588 = vand.u32 2147483647, %v568
  %v589 = vand.u32 2147483647, %v569
  %v590 = vand.u32 2147483647, %v570
  %v591 = vand.u32 2147483647, %v571
  %vm592 = vcmp.lt.f32.partialorder %v572, 1.0
  %vm593 = vcmp.lt.f32.partialorder %v573, 1.0
  %vm594 = vcmp.lt.f32.partialorder %v574, 1.0
  %vm595 = vcmp.lt.f32.partialorder %v575, 1.0
  %vm596 = vcmp.lt.f32.partialorder %v576, 1.0
  %vm597 = vcmp.lt.f32.partialorder %v577, 1.0
  %vm598 = vcmp.lt.f32.partialorder %v578, 1.0
  %vm599 = vcmp.lt.f32.partialorder %v579, 1.0
  %vm600 = vcmp.lt.f32.partialorder %v580, 1.0
  %vm601 = vcmp.lt.f32.partialorder %v581, 1.0
  %vm602 = vcmp.lt.f32.partialorder %v582, 1.0
  %vm603 = vcmp.lt.f32.partialorder %v583, 1.0
  %vm604 = vcmp.lt.f32.partialorder %v584, 1.0
  %vm605 = vcmp.lt.f32.partialorder %v585, 1.0
  %vm606 = vcmp.lt.f32.partialorder %v586, 1.0
  %vm607 = vcmp.lt.f32.partialorder %v587, 1.0
  %vm608 = vcmp.lt.f32.partialorder %v588, 1.0
  %vm609 = vcmp.lt.f32.partialorder %v589, 1.0
  %vm610 = vcmp.lt.f32.partialorder %v590, 1.0
  %vm611 = vcmp.lt.f32.partialorder %v591, 1.0
  %v612 = vmul.f32 %v552, 0.5
  %v613 = vmul.f32 %v553, 0.5
  %v614 = vmul.f32 %v554, 0.5
  %v615 = vmul.f32 %v555, 0.5
  %v616 = vmul.f32 %v556, 0.5
  %v617 = vmul.f32 %v557, 0.5
  %v618 = vmul.f32 %v558, 0.5
  %v619 = vmul.f32 %v559, 0.5
  %v620 = vmul.f32 %v560, 0.5
  %v621 = vmul.f32 %v561, 0.5
  %v622 = vmul.f32 %v562, 0.5
  %v623 = vmul.f32 %v563, 0.5
  %v624 = vmul.f32 %v564, 0.5
  %v625 = vmul.f32 %v565, 0.5
  %v626 = vmul.f32 %v566, 0.5
  %v627 = vmul.f32 %v567, 0.5
  %v628 = vmul.f32 %v568, 0.5
  %v629 = vmul.f32 %v569, 0.5
  %v630 = vmul.f32 %v570, 0.5
  %v631 = vmul.f32 %v571, 0.5
  %v632 = vmul.f32 %v612, %v552
  %v633 = vmul.f32 %v613, %v553
  %v634 = vmul.f32 %v614, %v554
  %v635 = vmul.f32 %v615, %v555
  %v636 = vmul.f32 %v616, %v556
  %v637 = vmul.f32 %v617, %v557
  %v638 = vmul.f32 %v618, %v558
  %v639 = vmul.f32 %v619, %v559
  %v640 = vmul.f32 %v620, %v560
  %v641 = vmul.f32 %v621, %v561
  %v642 = vmul.f32 %v622, %v562
  %v643 = vmul.f32 %v623, %v563
  %v644 = vmul.f32 %v624, %v564
  %v645 = vmul.f32 %v625, %v565
  %v646 = vmul.f32 %v626, %v566
  %v647 = vmul.f32 %v627, %v567
  %v648 = vmul.f32 %v628, %v568
  %v649 = vmul.f32 %v629, %v569
  %v650 = vmul.f32 %v630, %v570
  %v651 = vmul.f32 %v631, %v571
  %v652 = vsub.f32 %v572, 0.5
  %v653 = vsub.f32 %v573, 0.5
  %v654 = vsub.f32 %v574, 0.5
  %v655 = vsub.f32 %v575, 0.5
  %v656 = vsub.f32 %v576, 0.5
  %v657 = vsub.f32 %v577, 0.5
  %v658 = vsub.f32 %v578, 0.5
  %v659 = vsub.f32 %v579, 0.5
  %v660 = vsub.f32 %v580, 0.5
  %v661 = vsub.f32 %v581, 0.5
  %v662 = vsub.f32 %v582, 0.5
  %v663 = vsub.f32 %v583, 0.5
  %v664 = vsub.f32 %v584, 0.5
  %v665 = vsub.f32 %v585, 0.5
  %v666 = vsub.f32 %v586, 0.5
  %v667 = vsub.f32 %v587, 0.5
  %v668 = vsub.f32 %v588, 0.5
  %v669 = vsub.f32 %v589, 0.5
  %v670 = vsub.f32 %v590, 0.5
  %v671 = vsub.f32 %v591, 0.5
  %v672 = vsel %vm592, %v632, %v652
  %v673 = vsel %vm593, %v633, %v653
  %v674 = vsel %vm594, %v634, %v654
  %v675 = vsel %vm595, %v635, %v655
  %v676 = vsel %vm596, %v636, %v656
  %v677 = vsel %vm597, %v637, %v657
  %v678 = vsel %vm598, %v638, %v658
  %v679 = vsel %vm599, %v639, %v659
  %v680 = vsel %vm600, %v640, %v660
  %v681 = vsel %vm601, %v641, %v661
  %v682 = vsel %vm602, %v642, %v662
  %v683 = vsel %vm603, %v643, %v663
  %v684 = vsel %vm604, %v644, %v664
  %v685 = vsel %vm605, %v645, %v665
  %v686 = vsel %vm606, %v646, %v666
  %v687 = vsel %vm607, %v647, %v667
  %v688 = vsel %vm608, %v648, %v668
  %v689 = vsel %vm609, %v649, %v669
  %v690 = vsel %vm610, %v650, %v670
  %v691 = vsel %vm611, %v651, %v671
  %v702 = vcombine.high %v672, %v672
  %v703 = vcombine.high %v674, %v674
  %v704 = vcombine.high %v676, %v676
  %v705 = vcombine.high %v678, %v678
  %v706 = vcombine.high %v680, %v680
  %v707 = vcombine.high %v682, %v682
  %v708 = vcombine.high %v684, %v684
  %v709 = vcombine.high %v686, %v686
  %v710 = vcombine.high %v688, %v688
  %v711 = vcombine.high %v690, %v690
  %vm722 = vcmask 1043456
  %v723 = vsel %vm722, %v672, 0.0
  %v724 = vrot.slane %v723, 4
  %v725 = vadd.f32 %v723, %v724
  %v726 = vrot.slane %v725, 2
  %v727 = vadd.f32 %v725, %v726
  %v728 = vrot.slane %v727, 1
  %v729 = vadd.f32 %v727, %v728
  %v730 = vsel %vm722, %v702, 0.0
  %v731 = vrot.slane %v730, 4
  %v732 = vadd.f32 %v730, %v731
  %v733 = vrot.slane %v732, 2
  %v734 = vadd.f32 %v732, %v733
  %v735 = vrot.slane %v734, 1
  %v736 = vadd.f32 %v734, %v735
  %vm737 = vcmask 265216
  %v738 = vsel %vm737, %v673, 0.0
  %v739 = vrot.slane %v738, 4
  %v740 = vadd.f32 %v738, %v739
  %v741 = vrot.slane %v740, 2
  %v742 = vadd.f32 %v740, %v741
  %v743 = vrot.slane %v742, 1
  %v744 = vadd.f32 %v742, %v743
  %v745 = vsel %vm722, %v674, 0.0
  %v746 = vrot.slane %v745, 4
  %v747 = vadd.f32 %v745, %v746
  %v748 = vrot.slane %v747, 2
  %v749 = vadd.f32 %v747, %v748
  %v750 = vrot.slane %v749, 1
  %v751 = vadd.f32 %v749, %v750
  %v752 = vsel %vm722, %v703, 0.0
  %v753 = vrot.slane %v752, 4
  %v754 = vadd.f32 %v752, %v753
  %v755 = vrot.slane %v754, 2
  %v756 = vadd.f32 %v754, %v755
  %v757 = vrot.slane %v756, 1
  %v758 = vadd.f32 %v756, %v757
  %v759 = vsel %vm737, %v675, 0.0
  %v760 = vrot.slane %v759, 4
  %v761 = vadd.f32 %v759, %v760
  %v762 = vrot.slane %v761, 2
  %v763 = vadd.f32 %v761, %v762
  %v764 = vrot.slane %v763, 1
  %v765 = vadd.f32 %v763, %v764
  %v766 = vsel %vm722, %v676, 0.0
  %v767 = vrot.slane %v766, 4
  %v768 = vadd.f32 %v766, %v767
  %v769 = vrot.slane %v768, 2
  %v770 = vadd.f32 %v768, %v769
  %v771 = vrot.slane %v770, 1
  %v772 = vadd.f32 %v770, %v771
  %v773 = vsel %vm722, %v704, 0.0
  %v774 = vrot.slane %v773, 4
  %v775 = vadd.f32 %v773, %v774
  %v776 = vrot.slane %v775, 2
  %v777 = vadd.f32 %v775, %v776
  %v778 = vrot.slane %v777, 1
  %v779 = vadd.f32 %v777, %v778
  %v780 = vsel %vm737, %v677, 0.0
  %v781 = vrot.slane %v780, 4
  %v782 = vadd.f32 %v780, %v781
  %v783 = vrot.slane %v782, 2
  %v784 = vadd.f32 %v782, %v783
  %v785 = vrot.slane %v784, 1
  %v786 = vadd.f32 %v784, %v785
  %v787 = vsel %vm722, %v678, 0.0
  %v788 = vrot.slane %v787, 4
  %v789 = vadd.f32 %v787, %v788
  %v790 = vrot.slane %v789, 2
  %v791 = vadd.f32 %v789, %v790
  %v792 = vrot.slane %v791, 1
  %v793 = vadd.f32 %v791, %v792
  %v794 = vsel %vm722, %v705, 0.0
  %v795 = vrot.slane %v794, 4
  %v796 = vadd.f32 %v794, %v795
  %v797 = vrot.slane %v796, 2
  %v798 = vadd.f32 %v796, %v797
  %v799 = vrot.slane %v798, 1
  %v800 = vadd.f32 %v798, %v799
  %v801 = vsel %vm737, %v679, 0.0
  %v802 = vrot.slane %v801, 4
  %v803 = vadd.f32 %v801, %v802
  %v804 = vrot.slane %v803, 2
  %v805 = vadd.f32 %v803, %v804
  %v806 = vrot.slane %v805, 1
  %v807 = vadd.f32 %v805, %v806
  %v808 = vsel %vm722, %v680, 0.0
  %v809 = vrot.slane %v808, 4
  %v810 = vadd.f32 %v808, %v809
  %v811 = vrot.slane %v810, 2
  %v812 = vadd.f32 %v810, %v811
  %v813 = vrot.slane %v812, 1
  %v814 = vadd.f32 %v812, %v813
  %v815 = vsel %vm722, %v706, 0.0
  %v816 = vrot.slane %v815, 4
  %v817 = vadd.f32 %v815, %v816
  %v818 = vrot.slane %v817, 2
  %v819 = vadd.f32 %v817, %v818
  %v820 = vrot.slane %v819, 1
  %v821 = vadd.f32 %v819, %v820
  %v822 = vsel %vm737, %v681, 0.0
  %v823 = vrot.slane %v822, 4
  %v824 = vadd.f32 %v822, %v823
  %v825 = vrot.slane %v824, 2
  %v826 = vadd.f32 %v824, %v825
  %v827 = vrot.slane %v826, 1
  %v828 = vadd.f32 %v826, %v827
  %v829 = vsel %vm722, %v682, 0.0
  %v830 = vrot.slane %v829, 4
  %v831 = vadd.f32 %v829, %v830
  %v832 = vrot.slane %v831, 2
  %v833 = vadd.f32 %v831, %v832
  %v834 = vrot.slane %v833, 1
  %v835 = vadd.f32 %v833, %v834
  %v836 = vsel %vm722, %v707, 0.0
  %v837 = vrot.slane %v836, 4
  %v838 = vadd.f32 %v836, %v837
  %v839 = vrot.slane %v838, 2
  %v840 = vadd.f32 %v838, %v839
  %v841 = vrot.slane %v840, 1
  %v842 = vadd.f32 %v840, %v841
  %v843 = vsel %vm737, %v683, 0.0
  %v844 = vrot.slane %v843, 4
  %v845 = vadd.f32 %v843, %v844
  %v846 = vrot.slane %v845, 2
  %v847 = vadd.f32 %v845, %v846
  %v848 = vrot.slane %v847, 1
  %v849 = vadd.f32 %v847, %v848
  %v850 = vsel %vm722, %v684, 0.0
  %v851 = vrot.slane %v850, 4
  %v852 = vadd.f32 %v850, %v851
  %v853 = vrot.slane %v852, 2
  %v854 = vadd.f32 %v852, %v853
  %v855 = vrot.slane %v854, 1
  %v856 = vadd.f32 %v854, %v855
  %v857 = vsel %vm722, %v708, 0.0
  %v858 = vrot.slane %v857, 4
  %v859 = vadd.f32 %v857, %v858
  %v860 = vrot.slane %v859, 2
  %v861 = vadd.f32 %v859, %v860
  %v862 = vrot.slane %v861, 1
  %v863 = vadd.f32 %v861, %v862
  %v864 = vsel %vm737, %v685, 0.0
  %v865 = vrot.slane %v864, 4
  %v866 = vadd.f32 %v864, %v865
  %v867 = vrot.slane %v866, 2
  %v868 = vadd.f32 %v866, %v867
  %v869 = vrot.slane %v868, 1
  %v870 = vadd.f32 %v868, %v869
  %v871 = vsel %vm722, %v686, 0.0
  %v872 = vrot.slane %v871, 4
  %v873 = vadd.f32 %v871, %v872
  %v874 = vrot.slane %v873, 2
  %v875 = vadd.f32 %v873, %v874
  %v876 = vrot.slane %v875, 1
  %v877 = vadd.f32 %v875, %v876
  %v878 = vsel %vm722, %v709, 0.0
  %v879 = vrot.slane %v878, 4
  %v880 = vadd.f32 %v878, %v879
  %v881 = vrot.slane %v880, 2
  %v882 = vadd.f32 %v880, %v881
  %v883 = vrot.slane %v882, 1
  %v884 = vadd.f32 %v882, %v883
  %v885 = vsel %vm737, %v687, 0.0
  %v886 = vrot.slane %v885, 4
  %v887 = vadd.f32 %v885, %v886
  %v888 = vrot.slane %v887, 2
  %v889 = vadd.f32 %v887, %v888
  %v890 = vrot.slane %v889, 1
  %v891 = vadd.f32 %v889, %v890
  %v892 = vsel %vm722, %v688, 0.0
  %v893 = vrot.slane %v892, 4
  %v894 = vadd.f32 %v892, %v893
  %v895 = vrot.slane %v894, 2
  %v896 = vadd.f32 %v894, %v895
  %v897 = vrot.slane %v896, 1
  %v898 = vadd.f32 %v896, %v897
  %v899 = vsel %vm722, %v710, 0.0
  %v900 = vrot.slane %v899, 4
  %v901 = vadd.f32 %v899, %v900
  %v902 = vrot.slane %v901, 2
  %v903 = vadd.f32 %v901, %v902
  %v904 = vrot.slane %v903, 1
  %v905 = vadd.f32 %v903, %v904
  %v906 = vsel %vm737, %v689, 0.0
  %v907 = vrot.slane %v906, 4
  %v908 = vadd.f32 %v906, %v907
  %v909 = vrot.slane %v908, 2
  %v910 = vadd.f32 %v908, %v909
  %v911 = vrot.slane %v910, 1
  %v912 = vadd.f32 %v910, %v911
  %v913 = vsel %vm722, %v690, 0.0
  %v914 = vrot.slane %v913, 4
  %v915 = vadd.f32 %v913, %v914
  %v916 = vrot.slane %v915, 2
  %v917 = vadd.f32 %v915, %v916
  %v918 = vrot.slane %v917, 1
  %v919 = vadd.f32 %v917, %v918
  %v920 = vsel %vm722, %v711, 0.0
  %v921 = vrot.slane %v920, 4
  %v922 = vadd.f32 %v920, %v921
  %v923 = vrot.slane %v922, 2
  %v924 = vadd.f32 %v922, %v923
  %v925 = vrot.slane %v924, 1
  %v926 = vadd.f32 %v924, %v925
  %v927 = vsel %vm737, %v691, 0.0
  %v928 = vrot.slane %v927, 4
  %v929 = vadd.f32 %v927, %v928
  %v930 = vrot.slane %v929, 2
  %v931 = vadd.f32 %v929, %v930
  %v932 = vrot.slane %v931, 1
  %v933 = vadd.f32 %v931, %v932
  %vm934 = vcmask 1041408
  %v935 = vsel %vm934, %v509, 0.0
  %v936 = vadd.f32 %v506, %v935
  %v937 = vrot.slane %v936, 4
  %v938 = vadd.f32 %v936, %v937
  %v939 = vrot.slane %v938, 2
  %v940 = vadd.f32 %v938, %v939
  %v941 = vrot.slane %v940, 1
  %v942 = vadd.f32 %v940, %v941
  %v943 = vsel %vm934, %v510, 0.0
  %v944 = vadd.f32 %v507, %v943
  %v945 = vrot.slane %v944, 4
  %v946 = vadd.f32 %v944, %v945
  %v947 = vrot.slane %v946, 2
  %v948 = vadd.f32 %v946, %v947
  %v949 = vrot.slane %v948, 1
  %v950 = vadd.f32 %v948, %v949
  %vm951 = vcmask 269312
  %v952 = vsel %vm951, %v508, 0.0
  %vm953 = vcmask 263168
  %v954 = vsel %vm953, %v511, 0.0
  %v955 = vadd.f32 %v952, %v954
  %v956 = vrot.slane %v955, 4
  %v957 = vadd.f32 %v955, %v956
  %v958 = vrot.slane %v957, 2
  %v959 = vadd.f32 %v957, %v958
  %v960 = vrot.slane %v959, 1
  %v961 = vadd.f32 %v959, %v960
  %v968 = vrot.slane %v39, 1
  %v969 = vrot.slane %v40, 1
  %v970 = vrot.slane %v41, 1
  %v971 = vrot.slane %v39, 2
  %v972 = vrot.slane %v40, 2
  %v973 = vrot.slane %v41, 2
  %v974 = vrot.slane %v39, 3
  %v975 = vrot.slane %v40, 3
  %v976 = vrot.slane %v41, 3
  %v977 = vrot.slane %v39, 4
  %v978 = vrot.slane %v40, 4
  %v979 = vrot.slane %v41, 4
  %v980 = vrot.slane %v39, 5
  %v981 = vrot.slane %v40, 5
  %v982 = vrot.slane %v41, 5
  %v983 = vrot.slane %v39, 6
  %v984 = vrot.slane %v40, 6
  %v985 = vrot.slane %v41, 6
  %v986 = vrot.slane %v39, 7
  %v987 = vrot.slane %v40, 7
  %v988 = vrot.slane %v41, 7
  %v989 = vrot.slane %v42, 1
  %v990 = vrot.slane %v43, 1
  %v991 = vrot.slane %v44, 1
  %v1022 = vmul.f32 %v729, %v39
  %v1023 = vmul.f32 %v736, %v40
  %v1024 = vmul.f32 %v744, %v41
  %v1025 = vmul.f32 %v751, %v968
  %v1026 = vmul.f32 %v758, %v969
  %v1027 = vmul.f32 %v765, %v970
  %v1028 = vmul.f32 %v772, %v971
  %v1029 = vmul.f32 %v779, %v972
  %v1030 = vmul.f32 %v786, %v973
  %v1031 = vmul.f32 %v793, %v974
  %v1032 = vmul.f32 %v800, %v975
  %v1033 = vmul.f32 %v807, %v976
  %v1034 = vmul.f32 %v814, %v977
  %v1035 = vmul.f32 %v821, %v978
  %v1036 = vmul.f32 %v828, %v979
  %v1037 = vmul.f32 %v835, %v980
  %v1038 = vmul.f32 %v842, %v981
  %v1039 = vmul.f32 %v849, %v982
  %v1040 = vmul.f32 %v856, %v983
  %v1041 = vmul.f32 %v863, %v984
  %v1042 = vmul.f32 %v870, %v985
  %v1043 = vmul.f32 %v877, %v986
  %v1044 = vmul.f32 %v884, %v987
  %v1045 = vmul.f32 %v891, %v988
  %v1046 = vmul.f32 %v898, %v42
  %v1047 = vmul.f32 %v905, %v43
  %v1048 = vmul.f32 %v912, %v44
  %v1049 = vmul.f32 %v919, %v989
  %v1050 = vmul.f32 %v926, %v990
  %v1051 = vmul.f32 %v933, %v991
  %v1082 = vrot.slane %v1025, 7
  %v1083 = vsel %vm255, %v1082, %v1022
  %v1084 = vrot.slane %v1028, 6
  %v1085 = vsel %vm257, %v1084, %v1083
  %v1086 = vrot.slane %v1031, 5
  %v1087 = vsel %vm259, %v1086, %v1085
  %v1088 = vrot.slane %v1034, 4
  %v1089 = vsel %vm261, %v1088, %v1087
  %v1090 = vrot.slane %v1037, 3
  %v1091 = vsel %vm263, %v1090, %v1089
  %v1092 = vrot.slane %v1040, 2
  %v1093 = vsel %vm265, %v1092, %v1091
  %v1094 = vrot.slane %v1043, 1
  %v1095 = vsel %vm267, %v1094, %v1093
  %v1096 = vrot.slane %v1026, 7
  %v1097 = vsel %vm255, %v1096, %v1023
  %v1098 = vrot.slane %v1029, 6
  %v1099 = vsel %vm257, %v1098, %v1097
  %v1100 = vrot.slane %v1032, 5
  %v1101 = vsel %vm259, %v1100, %v1099
  %v1102 = vrot.slane %v1035, 4
  %v1103 = vsel %vm261, %v1102, %v1101
  %v1104 = vrot.slane %v1038, 3
  %v1105 = vsel %vm263, %v1104, %v1103
  %v1106 = vrot.slane %v1041, 2
  %v1107 = vsel %vm265, %v1106, %v1105
  %v1108 = vrot.slane %v1044, 1
  %v1109 = vsel %vm267, %v1108, %v1107
  %v1110 = vrot.slane %v1027, 7
  %v1111 = vsel %vm255, %v1110, %v1024
  %v1112 = vrot.slane %v1030, 6
  %v1113 = vsel %vm257, %v1112, %v1111
  %v1114 = vrot.slane %v1033, 5
  %v1115 = vsel %vm259, %v1114, %v1113
  %v1116 = vrot.slane %v1036, 4
  %v1117 = vsel %vm261, %v1116, %v1115
  %v1118 = vrot.slane %v1039, 3
  %v1119 = vsel %vm263, %v1118, %v1117
  %v1120 = vrot.slane %v1042, 2
  %v1121 = vsel %vm265, %v1120, %v1119
  %v1122 = vrot.slane %v1045, 1
  %v1123 = vsel %vm267, %v1122, %v1121
  %v1124 = vrot.slane %v1049, 7
  %v1125 = vsel %vm255, %v1124, %v1046
  %v1126 = vrot.slane %v1050, 7
  %v1127 = vsel %vm255, %v1126, %v1047
  %v1128 = vrot.slane %v1051, 7
  %v1129 = vsel %vm255, %v1128, %v1048
  %v1136 = vsel %vm934, %v1125, 0.0
  %v1137 = vadd.f32 %v1095, %v1136
  %v1138 = vrot.slane %v1137, 4
  %v1139 = vadd.f32 %v1137, %v1138
  %v1140 = vrot.slane %v1139, 2
  %v1141 = vadd.f32 %v1139, %v1140
  %v1142 = vrot.slane %v1141, 1
  %v1143 = vadd.f32 %v1141, %v1142
  %v1144 = vsel %vm934, %v1127, 0.0
  %v1145 = vadd.f32 %v1109, %v1144
  %v1146 = vrot.slane %v1145, 4
  %v1147 = vadd.f32 %v1145, %v1146
  %v1148 = vrot.slane %v1147, 2
  %v1149 = vadd.f32 %v1147, %v1148
  %v1150 = vrot.slane %v1149, 1
  %v1151 = vadd.f32 %v1149, %v1150
  %v1152 = vsel %vm951, %v1123, 0.0
  %v1153 = vsel %vm953, %v1129, 0.0
  %v1154 = vadd.f32 %v1152, %v1153
  %v1155 = vrot.slane %v1154, 4
  %v1156 = vadd.f32 %v1154, %v1155
  %v1157 = vrot.slane %v1156, 2
  %v1158 = vadd.f32 %v1156, %v1157
  %v1159 = vrot.slane %v1158, 1
  %v1160 = vadd.f32 %v1158, %v1159
  %v1161 = vsel %vm934, %v42, 0.0
  %v1162 = vadd.f32 %v39, %v1161
  %v1163 = vrot.slane %v1162, 4
  %v1164 = vadd.f32 %v1162, %v1163
  %v1165 = vrot.slane %v1164, 2
  %v1166 = vadd.f32 %v1164, %v1165
  %v1167 = vrot.slane %v1166, 1
  %v1168 = vadd.f32 %v1166, %v1167
  %v1169 = vsel %vm934, %v43, 0.0
  %v1170 = vadd.f32 %v40, %v1169
  %v1171 = vrot.slane %v1170, 4
  %v1172 = vadd.f32 %v1170, %v1171
  %v1173 = vrot.slane %v1172, 2
  %v1174 = vadd.f32 %v1172, %v1173
  %v1175 = vrot.slane %v1174, 1
  %v1176 = vadd.f32 %v1174, %v1175
  %v1177 = vsel %vm951, %v41, 0.0
  %v1178 = vsel %vm953, %v44, 0.0
  %v1179 = vadd.f32 %v1177, %v1178
  %v1180 = vrot.slane %v1179, 4
  %v1181 = vadd.f32 %v1179, %v1180
  %v1182 = vrot.slane %v1181, 2
  %v1183 = vadd.f32 %v1181, %v1182
  %v1184 = vrot.slane %v1183, 1
  %v1185 = vadd.f32 %v1183, %v1184
  %v1186 = vlaneseq
  %v1187 = vshrl.u32 %v1186, 7
  %vm1188 = vcmp.eq.s32.totalorder %v1187, 0
  %vm1189 = vcmp.eq.s32.totalorder %v1187, 1
  %v1190 = vlaneseq
  %v1191 = vshrl.u32 %v1190, 7
  %v1192 = vsub.s32 0, %v1191
  %v1193 = vrot.slane %v1143, %v1192
  %v1194 = vlaneseq
  %v1195 = vshrl.u32 %v1194, 7
  %v1196 = vsub.s32 0, %v1195
  %v1197 = vrot.slane %v1151, %v1196
  %v1198 = vlaneseq
  %v1199 = vshrl.u32 %v1198, 7
  %v1200 = vsub.s32 0, %v1199
  %v1201 = vrot.slane %v1160, %v1200
  %v1202 = vsel %vm1189, %v1193, %v1168
  %v1203 = vsel %vm1189, %v1197, %v1176
  %v1204 = vsel %vm1189, %v1201, %v1185
  %v1205 = vsel %vm1188, %v942, %v1202
  %v1206 = vsel %vm1188, %v950, %v1203
  %v1207 = vsel %vm1188, %v961, %v1204
  %vm1208 = vcmask 1042432
  %v1209 = vsel %vm1208, %v1205, 0.0
  %v1210 = vsel %vm1208, %v1206, 0.0
  %v1211 = vadd.f32 %v1209, %v1210
  %vm1212 = vcmask 264192
  %v1213 = vsel %vm1212, %v1207, 0.0
  %v1214 = vadd.f32 %v1211, %v1213
  %1215 = vadd.xlane.f32.xlu0 %v1214
  %v1216 = vpop.xlane.xlu0 %1215
  %v1217 = vsel %vm1188, %v1216, 0.0
  %vm1218 = vcmask 2048
  %v1219 = vsel %vm1218, %v1217, 0.0
  %1220 = vadd.xlane.f32.xlu0 %v1219
  %v1221 = vpop.xlane.xlu0 %1220
  %v1222 = vrot.slane %v1221, 4
  %v1223 = vadd.f32 %v1221, %v1222
  %v1224 = vrot.slane %v1223, 2
  %v1225 = vadd.f32 %v1223, %v1224
  %v1226 = vrot.slane %v1225, 1
  %v1227 = vadd.f32 %v1225, %v1226
  %s1228 = vtos %v1227
  %v1229 = vsel %vm1189, %v1216, 0.0
  %v1230 = vsel %vm1218, %v1229, 0.0
  %1231 = vadd.xlane.f32.xlu0 %v1230
  %v1232 = vpop.xlane.xlu0 %1231
  %v1233 = vrot.slane %v1232, 4
  %v1234 = vadd.f32 %v1232, %v1233
  %v1235 = vrot.slane %v1234, 2
  %v1236 = vadd.f32 %v1234, %v1235
  %v1237 = vrot.slane %v1236, 1
  %v1238 = vadd.f32 %v1236, %v1237
  %s1239 = vtos %v1238
  %vm1240 = vcmp.eq.s32.totalorder %v1187, 2
  %v1241 = vsel %vm1240, %v1216, 0.0
  %v1242 = vsel %vm1218, %v1241, 0.0
  %1243 = vadd.xlane.f32.xlu0 %v1242
  %v1244 = vpop.xlane.xlu0 %1243
  %v1245 = vrot.slane %v1244, 4
  %v1246 = vadd.f32 %v1244, %v1245
  %v1247 = vrot.slane %v1246, 2
  %v1248 = vadd.f32 %v1246, %v1247
  %v1249 = vrot.slane %v1248, 1
  %v1250 = vadd.f32 %v1248, %v1249
  %s1251 = vtos %v1250
  %s1252 = smul.f32 %s1228, 0.00034602077
  %s1253 = smul.f32 %s1251, 4.0
  %s1254 = sadd.f32 %s1253, 0.0001
  %v1255 = vstv %s1254
  %v1256 = vrcp.pop %v1255
  %s1257 = vtos %v1256
  %s1258 = smul.f32 %s1239, %s1257
  %s1259 = sld [smem:[#allocation2]]
  %s1260 = smul.f32 %s1259, %s1258
  %s1261 = sadd.f32 %s1252, %s1260
  %v1262 = vlaneseq
  %v1263 = vand.u32 %v1262, 127
  %vm1264 = vcmp.eq.s32.totalorder %v1263, 0
  %vm1265 = vcmp.eq.s32.totalorder %v1263, 1
  %vm1266 = vcmp.eq.s32.totalorder %v1263, 2
  %v1267 = vstv %s1258
  %v1268 = vsel %vm1266, %v1267, 0.0
  %v1269 = vstv %s1252
  %v1270 = vsel %vm1265, %v1269, %v1268
  %v1271 = vstv %s1261
  %v1272 = vsel %vm1264, %v1271, %v1270
  %1273 = vst [vmem:[%s5] sm:$0x1] %v1272
  // Predicated region
  $region22: #{myloss.1} parent=0 // pred_check
    _
  $region23: #{myloss.1} parent=0 // pred_check_branch
    %1275 = sbr.rel (0) target = $region25
  $region24: #{myloss.1} parent=0 // pred_region
    _
  $region25: #{myloss.1} parent=0 // pred_fallthru
    _
  // Predicated region
  $region26: #{myloss.1} parent=0 // pred_check
    _
  $region27: #{myloss.1} parent=0 // pred_check_branch
    %1277 = sbr.rel (0) target = $region29
  $region28: #{myloss.1} parent=0 // pred_region
    _
  $region29: #{myloss.1} parent=0 // pred_fallthru
    _

</llo_original>
